<compile_context>
chip_gen: v7x
topology: tpu7x:2x2x1
jax: 0.10.0
libtpu: 0.0.40
codegen_flags: <defaults>
</compile_context>

<pallas_src>
import numpy as np
import jax
import jax.numpy as jnp
from jax.experimental import pallas as pl
from jax.experimental.pallas import tpu as pltpu


# ----------------------------------------------------------------------------
# Kernel A: tiled matmul with fused affine epilogue (+ optional ReLU)
# ----------------------------------------------------------------------------
def _mm_affine_kernel(relu):
    def kernel(a_ref, b_ref, s_ref, c_ref, o_ref, acc_ref):
        @pl.when(pl.program_id(2) == 0)
        def _init():
            acc_ref[...] = jnp.zeros_like(acc_ref)

        acc_ref[...] += jnp.dot(a_ref[...], b_ref[...],
                                preferred_element_type=jnp.float32)

        @pl.when(pl.program_id(2) == pl.num_programs(2) - 1)
        def _fin():
            y = acc_ref[...] * s_ref[...] + c_ref[...]
            if relu:
                y = jnp.maximum(y, 0.0)
            o_ref[...] = y.astype(o_ref.dtype)

    return kernel


def _pick_blocks(M, K, N):
    """Per-call block sizes. Small dims use full-dim blocks (no padding)."""
    if M <= 512:
        bm, Mp = M, M
    else:
        bm = 256
        Mp = M + (-M) % bm
    if K <= 1024:
        bk, Kp = K, K
    else:
        bk = 1024
        Kp = K + (-K) % bk
    if N >= 512 and N % 256 == 0:
        # >=2 lane-dense (>=256 wide) output blocks: fills the 256-wide MXU on
        # v6e/v7x and gives both v7x TensorCores work.
        bn = 512 if (N % 512 == 0 and N > 512) else 256
        Np = N
    elif N <= 512:
        bn, Np = N, N
    else:
        bn = 256
        Np = N + (-N) % bn
    return bm, bk, bn, Mp, Kp, Np


def _pad2(x, rows, cols):
    pr, pc = rows - x.shape[0], cols - x.shape[1]
    if pr == 0 and pc == 0:
        return x
    return jnp.pad(x, ((0, pr), (0, pc)))


def matmul_affine(a, b, scale, bias, relu=False, out_dtype=jnp.bfloat16):
    """(a @ b) * scale + bias (+ReLU).  a:(M,K)  b:(K,N)  scale,bias:(N,).

    bf16 operands on the MXU, f32 accumulation, f32 epilogue, out_dtype out.
    """
    M, K = a.shape
    K2, N = b.shape
    assert K == K2
    bm, bk, bn, Mp, Kp, Np = _pick_blocks(M, K, N)
    a_p = _pad2(a.astype(jnp.bfloat16), Mp, Kp)
    b_p = _pad2(b.astype(jnp.bfloat16), Kp, Np)
    s_p = _pad2(scale.astype(jnp.float32).reshape(1, -1), 1, Np)
    c_p = _pad2(bias.astype(jnp.float32).reshape(1, -1), 1, Np)
    grid = (Mp // bm, Np // bn, Kp // bk)

    out = pl.pallas_call(
        _mm_affine_kernel(relu),
        out_shape=jax.ShapeDtypeStruct((Mp, Np), out_dtype),
        grid_spec=pltpu.PrefetchScalarGridSpec(
            num_scalar_prefetch=0,
            grid=grid,
            in_specs=[
                pl.BlockSpec((bm, bk), lambda i, j, k: (i, k)),
                pl.BlockSpec((bk, bn), lambda i, j, k: (k, j)),
                pl.BlockSpec((1, bn), lambda i, j, k: (0, j)),
                pl.BlockSpec((1, bn), lambda i, j, k: (0, j)),
            ],
            out_specs=pl.BlockSpec((bm, bn), lambda i, j, k: (i, j)),
            scratch_shapes=[pltpu.VMEM((bm, bn), jnp.float32)],
        ),
        compiler_params=pltpu.CompilerParams(
            dimension_semantics=("parallel", "parallel", "arbitrary"),
            vmem_limit_bytes=64 * 1024 * 1024),
    )(a_p, b_p, s_p, c_p)
    if (Mp, Np) != (M, N):
        out = out[:M, :N]
    return out


# ----------------------------------------------------------------------------
# Kernel B: batched spatial operator  out[n] = Mop @ x[n]   (no affine)
# ----------------------------------------------------------------------------
def _spatial_kernel(m_ref, x_ref, o_ref):
    o_ref[0] = jnp.dot(m_ref[...], x_ref[0].astype(jnp.float32),
                       preferred_element_type=jnp.float32).astype(o_ref.dtype)


def spatial_apply(mat, x, out_dtype=None):
    """x:(B, S_in, C), mat:(S_out, S_in) -> (B, S_out, C).  Pool / interp."""
    B, S_in, C = x.shape
    S_out = mat.shape[0]
    if out_dtype is None:
        out_dtype = x.dtype
    return pl.pallas_call(
        _spatial_kernel,
        out_shape=jax.ShapeDtypeStruct((B, S_out, C), out_dtype),
        grid_spec=pltpu.PrefetchScalarGridSpec(
            num_scalar_prefetch=0,
            grid=(B,),
            in_specs=[
                pl.BlockSpec((S_out, S_in), lambda n: (0, 0)),
                pl.BlockSpec((1, S_in, C), lambda n: (n, 0, 0)),
            ],
            out_specs=pl.BlockSpec((1, S_out, C), lambda n: (n, 0, 0)),
        ),
        compiler_params=pltpu.CompilerParams(
            dimension_semantics=("parallel",),
            vmem_limit_bytes=64 * 1024 * 1024),
    )(jnp.asarray(mat, jnp.float32), x)


# ----------------------------------------------------------------------------
# Glue helpers (layout plumbing and tiny matrix builders)
# ----------------------------------------------------------------------------
def bn_fold(bn, eps=1e-5):
    gamma, beta, mean, var = bn
    scale = gamma / jnp.sqrt(var + eps)
    bias = beta - mean * scale
    return scale, bias


def conv1x1(x, w, scale, bias, relu, out_dtype=jnp.bfloat16):
    """Pointwise 1x1x1 conv + affine (+ReLU) on an NDHWC tensor."""
    N, D, H, W, C = x.shape
    out = matmul_affine(x.reshape(-1, C), w, scale, bias, relu, out_dtype)
    return out.reshape(N, D, H, W, w.shape[1])


def pool_matrix_1d(in_size, out_size):
    m = np.zeros((out_size, in_size), dtype=np.float32)
    for o in range(out_size):
        s = (o * in_size) // out_size
        e = int(np.ceil((o + 1) * in_size / out_size))
        m[o, s:e] = 1.0 / (e - s)
    return m


def interp_matrix_1d(in_size, out_size):
    m = np.zeros((out_size, in_size), dtype=np.float32)
    for o in range(out_size):
        c = 0.0 if out_size == 1 else o * (in_size - 1) / (out_size - 1)
        lo = int(np.floor(c))
        hi = min(lo + 1, in_size - 1)
        frac = c - lo
        m[o, lo] += 1.0 - frac
        m[o, hi] += frac
    return m


def kron3(md, mh, mw):
    return np.kron(np.kron(md, mh), mw)


def pool_matrix_3d(in_dhw, out_dhw):
    return kron3(pool_matrix_1d(in_dhw[0], out_dhw[0]),
                 pool_matrix_1d(in_dhw[1], out_dhw[1]),
                 pool_matrix_1d(in_dhw[2], out_dhw[2]))


def interp_matrix_3d(in_dhw, out_dhw):
    return kron3(interp_matrix_1d(in_dhw[0], out_dhw[0]),
                 interp_matrix_1d(in_dhw[1], out_dhw[1]),
                 interp_matrix_1d(in_dhw[2], out_dhw[2]))


def block_diag(mats):
    rows = sum(m.shape[0] for m in mats)
    cols = sum(m.shape[1] for m in mats)
    out = np.zeros((rows, cols), np.float32)
    r = c = 0
    for m in mats:
        out[r:r + m.shape[0], c:c + m.shape[1]] = m
        r += m.shape[0]
        c += m.shape[1]
    return out


def im2col_133(x):
    """im2col for a (1,3,3) kernel, padding (0,1,1), NDHWC layout (bf16)."""
    N, D, H, W, C = x.shape
    xp = jnp.pad(x, ((0, 0), (0, 0), (1, 1), (1, 1), (0, 0)))
    cols = []
    for kh in range(3):
        for kw in range(3):
            cols.append(xp[:, :, kh:kh + H, kw:kw + W, :])
    return jnp.concatenate(cols, axis=-1)  # (N, D, H, W, 9C)


# ----------------------------------------------------------------------------
# Deterministic parameter construction
# ----------------------------------------------------------------------------
def _bn_params(key, c):
    k1, k2, k3, k4 = jax.random.split(key, 4)
    gamma = 1.0 + 0.1 * jax.random.normal(k1, (c,), jnp.float32)
    beta = 0.1 * jax.random.normal(k2, (c,), jnp.float32)
    mean = 0.1 * jax.random.normal(k3, (c,), jnp.float32)
    var = 0.5 + jax.random.uniform(k4, (c,), jnp.float32)
    return gamma, beta, mean, var


def _conv_w(key, cin, cout):
    return 0.05 * jax.random.normal(key, (cin, cout), jnp.float32)


def init_params(key, in_ch=4, classes=2, bins=(1, 2, 3, 6)):
    keys = iter(jax.random.split(key, 64))
    params = {}

    # Backbone stand-in: layer0..layer4
    widths = [in_ch, 64, 256, 512, 1024, 512]
    params['backbone'] = []
    for cin, cout in zip(widths[:-1], widths[1:]):
        params['backbone'].append(
            (_conv_w(next(keys), cin, cout), _bn_params(next(keys), cout)))

    fea_dim = 512
    red = fea_dim // len(bins)  # 128
    params['ppm'] = []
    for _ in bins:
        params['ppm'].append(
            (_conv_w(next(keys), fea_dim, red), _bn_params(next(keys), red)))

    cls_in = fea_dim * 2  # 1024 after PPM concat
    params['cls_conv1'] = (_conv_w(next(keys), 9 * cls_in, 512),
                           _bn_params(next(keys), 512))
    params['cls_conv2'] = (_conv_w(next(keys), 512, classes),
                           0.05 * jax.random.normal(next(keys), (classes,),
                                                    jnp.float32))
    return params


# ----------------------------------------------------------------------------
# PSPNet3D forward (eval mode)
# ----------------------------------------------------------------------------
def pspnet3d_forward(params, x_ncdhw, bins=(1, 2, 3, 6), zoom_factor=8,
                     classes=2):
    N, C, D, H, W = x_ncdhw.shape
    h = int((D - 1) / 8 * zoom_factor + 1)   # module uses x_size[2]
    w = int((H - 1) / 8 * zoom_factor + 1)   # module uses x_size[3]

    # channels-last, bf16 activations throughout (f32 accumulation in-kernel)
    x = jnp.transpose(x_ncdhw, (0, 2, 3, 4, 1)).astype(jnp.bfloat16)  # NDHWC

    # --- backbone stand-in (layer0..layer4), total /8 stride on (H, W) ---
    strides = [(1, 2, 2), (1, 1, 1), (1, 2, 2), (1, 2, 2), (1, 1, 1)]
    for (wgt, bn), st in zip(params['backbone'], strides):
        x = x[:, ::st[0], ::st[1], ::st[2], :]
        s, b = bn_fold(bn)
        x = conv1x1(x, wgt, s, b, relu=True)
    feat = x                                    # (N, Dp, Hp, Wp, 512)
    _, Dp, Hp, Wp, Cf = feat.shape
    S = Dp * Hp * Wp
    featf = feat.reshape(N, S, Cf)

    # --- PPM: one pooling matmul, one batched reduction, one upsample ---
    nb = len(bins)
    red = Cf // nb
    sizes = [b ** 3 for b in bins]
    offs = np.cumsum([0] + sizes)

    # 1) all bins' adaptive-avg-pools as one stacked matrix
    pool_all = np.concatenate(
        [pool_matrix_3d((Dp, Hp, Wp), (b,) * 3) for b in bins], axis=0)
    pooled = spatial_apply(pool_all, featf)          # (N, sum(b^3), 512)

    # 2) all bins' 512->128 conv+BN+ReLU with concatenated weights; each bin's
    #    rows later pick their own 128-column slice.
    w_cat = jnp.concatenate([w_ for (w_, _) in params['ppm']], axis=1)
    scale_cat = jnp.concatenate([bn_fold(bn)[0] for (_, bn) in params['ppm']])
    bias_cat = jnp.concatenate([bn_fold(bn)[1] for (_, bn) in params['ppm']])
    red_all = matmul_affine(pooled.reshape(-1, Cf), w_cat, scale_cat,
                            bias_cat, relu=True)
    red_all = red_all.reshape(N, int(offs[-1]), nb * red)
    red_cat = jnp.concatenate(
        [red_all[:, int(offs[i]):int(offs[i + 1]), i * red:(i + 1) * red]
         for i in range(nb)], axis=1)                # (N, sum(b^3), 128)

    # 3) all bins' trilinear (align_corners=True) upsamples as one
    #    block-diagonal matrix
    up_bd = block_diag(
        [interp_matrix_3d((b,) * 3, (Dp, Hp, Wp)) for b in bins])
    up_all = spatial_apply(up_bd, red_cat)           # (N, nb*S, 128)
    ppm_feat = up_all.reshape(N, nb, S, red).transpose(0, 2, 1, 3)
    ppm_feat = ppm_feat.reshape(N, S, nb * red)

    x = jnp.concatenate([featf, ppm_feat], axis=-1)  # (N, S, 1024)
    x = x.reshape(N, Dp, Hp, Wp, 2 * Cf)

    # --- cls head: Conv3d(1024,512,(1,3,3),pad=(0,1,1)) + BN + ReLU ---
    wc1, bnc1 = params['cls_conv1']
    s, b = bn_fold(bnc1)
    cols = im2col_133(x)
    y = matmul_affine(cols.reshape(-1, cols.shape[-1]), wc1, s, b, relu=True)
    y = y.reshape(N, Dp, Hp, Wp, 512)
    # Dropout3d(p=0.1): identity in eval mode.

    # Conv3d(512, classes, 1) with bias -- keep logits in f32
    wc2, bc2 = params['cls_conv2']
    y = conv1x1(y, wc2, jnp.ones((classes,), jnp.float32), bc2, relu=False,
                out_dtype=jnp.float32)

    # --- final trilinear upsample (align_corners=True), (H,W)->(h,w) ---
    if zoom_factor != 1:
        imat = interp_matrix_3d((Dp, Hp, Wp), (Dp, h, w))
        y = spatial_apply(imat, y.reshape(N, S, classes),
                          out_dtype=jnp.float32)
        y = y.reshape(N, Dp, h, w, classes)

    return jnp.transpose(y, (0, 4, 1, 2, 3))    # NCDHW: (N, classes, Dp, h, w)


if __name__ == "__main__":
    key = jax.random.PRNGKey(0)
    k_param, k_input = jax.random.split(key)

    # Input (NCDHW): batch=2, channels=4, D=3, H=16, W=16
    x = jax.random.normal(k_input, (2, 4, 3, 16, 16), jnp.float32)
    params = init_params(k_param, in_ch=4, classes=2, bins=(1, 2, 3, 6))

    out = pspnet3d_forward(params, x, bins=(1, 2, 3, 6), zoom_factor=8,
                           classes=2)
    out = jax.block_until_ready(out)

    expected = (2, 2, 3, 3, 16)  # (N, classes, D', h, w) with h=D_in, w=H_in
    assert out.shape == expected, (out.shape, expected)
    assert bool(jnp.all(jnp.isfinite(out)))
    print("KERNEL_OK")
</pallas_src>

<mosaic_0001>
module attributes {stable_mosaic.version = 11 : i64} {
  func.func @kernel(%arg0: i32, %arg1: i32, %arg2: i32, %arg3: memref<384x4xbf16, #tpu.memory_space<vmem>>, %arg4: memref<4x64xbf16, #tpu.memory_space<vmem>>, %arg5: memref<1x64xf32, #tpu.memory_space<vmem>>, %arg6: memref<1x64xf32, #tpu.memory_space<vmem>>, %arg7: memref<384x64xbf16, #tpu.memory_space<vmem>>, %arg8: memref<384x64xf32, #tpu.memory_space<vmem>>) attributes {dimension_semantics = [#tpu.dimension_semantics<parallel>, #tpu.dimension_semantics<parallel>, #tpu.dimension_semantics<arbitrary>], iteration_bounds = array<i64: 1, 1, 1>, scalar_prefetch = 0 : i64, scratch_operands = 1 : i64, tpu.core_type = #tpu.core_type<tc>, window_params = [{transform_indices = @transform_0, window_bounds = array<i64: 384, 4>}, {transform_indices = @transform_1, window_bounds = array<i64: 4, 64>}, {transform_indices = @transform_2, window_bounds = array<i64: 1, 64>}, {transform_indices = @transform_3, window_bounds = array<i64: 1, 64>}, {transform_indices = @transform_4, window_bounds = array<i64: 384, 64>}]} {
    %c0_i32 = arith.constant 0 : i32
    %0 = arith.cmpi eq, %arg2, %c0_i32 : i32
    %1 = arith.extui %0 : i1 to i32
    %c0_i32_0 = arith.constant 0 : i32
    %2 = arith.cmpi ne, %1, %c0_i32_0 : i32
    scf.if %2 {
      %cst_10 = arith.constant 0.000000e+00 : f32
      %12 = vector.broadcast %cst_10 : f32 to vector<384x64xf32>
      %c0_11 = arith.constant 0 : index
      %c0_12 = arith.constant 0 : index
      %13 = vector.load %arg8[%c0_11, %c0_12] : memref<384x64xf32, #tpu.memory_space<vmem>>, vector<384x64xf32>
      tpu.vector_store %arg8[%c0_11, %c0_12], %12 {strides = array<i32>} : memref<384x64xf32, #tpu.memory_space<vmem>>, vector<384x64xf32>,
    } else {
    }
    %c0 = arith.constant 0 : index
    %c0_1 = arith.constant 0 : index
    %3 = vector.load %arg8[%c0, %c0_1] : memref<384x64xf32, #tpu.memory_space<vmem>>, vector<384x64xf32>
    %c0_2 = arith.constant 0 : index
    %c0_3 = arith.constant 0 : index
    %4 = vector.load %arg3[%c0_2, %c0_3] : memref<384x4xbf16, #tpu.memory_space<vmem>>, vector<384x4xbf16>
    %c0_4 = arith.constant 0 : index
    %c0_5 = arith.constant 0 : index
    %5 = vector.load %arg4[%c0_4, %c0_5] : memref<4x64xbf16, #tpu.memory_space<vmem>>, vector<4x64xbf16>
    %cst = arith.constant dense<0.000000e+00> : vector<384x64xf32>
    %6 = tpu.matmul %4, %5, %cst {dimension_numbers = #tpu.dot_dimension_numbers<[1], [0], [0], [1], [0, 0, 1, 1], [], []>} : vector<384x4xbf16>, vector<4x64xbf16>, vector<384x64xf32> -> vector<384x64xf32>
    %7 = arith.addf %3, %6 : vector<384x64xf32>
    %c0_6 = arith.constant 0 : index
    %c0_7 = arith.constant 0 : index
    %8 = vector.load %arg8[%c0_6, %c0_7] : memref<384x64xf32, #tpu.memory_space<vmem>>, vector<384x64xf32>
    tpu.vector_store %arg8[%c0_6, %c0_7], %7 {strides = array<i32>} : memref<384x64xf32, #tpu.memory_space<vmem>>, vector<384x64xf32>,
    %c0_i32_8 = arith.constant 0 : i32
    %9 = arith.cmpi eq, %arg2, %c0_i32_8 : i32
    %10 = arith.extui %9 : i1 to i32
    %c0_i32_9 = arith.constant 0 : i32
    %11 = arith.cmpi ne, %10, %c0_i32_9 : i32
    scf.if %11 {
      %c0_10 = arith.constant 0 : index
      %c0_11 = arith.constant 0 : index
      %12 = vector.load %arg8[%c0_10, %c0_11] : memref<384x64xf32, #tpu.memory_space<vmem>>, vector<384x64xf32>
      %c0_12 = arith.constant 0 : index
      %c0_13 = arith.constant 0 : index
      %13 = vector.load %arg5[%c0_12, %c0_13] : memref<1x64xf32, #tpu.memory_space<vmem>>, vector<1x64xf32>
      %14 = vector.broadcast %13 : vector<1x64xf32> to vector<384x64xf32>
      %15 = arith.mulf %12, %14 : vector<384x64xf32>
      %c0_14 = arith.constant 0 : index
      %c0_15 = arith.constant 0 : index
      %16 = vector.load %arg6[%c0_14, %c0_15] : memref<1x64xf32, #tpu.memory_space<vmem>>, vector<1x64xf32>
      %17 = vector.broadcast %16 : vector<1x64xf32> to vector<384x64xf32>
      %18 = arith.addf %15, %17 : vector<384x64xf32>
      %cst_16 = arith.constant 0.000000e+00 : f32
      %19 = vector.broadcast %cst_16 : f32 to vector<384x64xf32>
      %20 = arith.maximumf %18, %19 : vector<384x64xf32>
      %21 = arith.truncf %20 : vector<384x64xf32> to vector<384x64xbf16>
      %c0_17 = arith.constant 0 : index
      %c0_18 = arith.constant 0 : index
      %22 = vector.load %arg7[%c0_17, %c0_18] : memref<384x64xbf16, #tpu.memory_space<vmem>>, vector<384x64xbf16>
      tpu.vector_store %arg7[%c0_17, %c0_18], %21 {strides = array<i32>} : memref<384x64xbf16, #tpu.memory_space<vmem>>, vector<384x64xbf16>,
    } else {
    }
    return
  }
  func.func @transform_0(%arg0: i32, %arg1: i32, %arg2: i32) -> (i32, i32) {
    %c0_i32 = arith.constant 0 : i32
    return %arg0, %arg2 : i32, i32
  }
  func.func @transform_1(%arg0: i32, %arg1: i32, %arg2: i32) -> (i32, i32) {
    %c0_i32 = arith.constant 0 : i32
    return %arg2, %arg1 : i32, i32
  }
  func.func @transform_2(%arg0: i32, %arg1: i32, %arg2: i32) -> (i32, i32) {
    %c0_i32 = arith.constant 0 : i32
    %c0_i32_0 = arith.constant 0 : i32
    return %c0_i32, %arg1 : i32, i32
  }
  func.func @transform_3(%arg0: i32, %arg1: i32, %arg2: i32) -> (i32, i32) {
    %c0_i32 = arith.constant 0 : i32
    %c0_i32_0 = arith.constant 0 : i32
    return %c0_i32, %arg1 : i32, i32
  }
  func.func @transform_4(%arg0: i32, %arg1: i32, %arg2: i32) -> (i32, i32) {
    %c0_i32 = arith.constant 0 : i32
    return %arg0, %arg1 : i32, i32
  }
}

</mosaic_0001>

<llo_original>
// kernel: tpu_custom_call.1
$region0: #{tpu_custom_call.1}
  #allocation0 [shape = 'u32[]', space=smem, size = 0x4, offset = 0x4, fixed_abs, tag = 'smem constant byte address 0x4 - core index']
  #allocation1 [shape = 'u32[144,128]{1,0:T(1,128)}', space=vmem, size = 0x12000, scoped, tag = 'internal scratch']
  #allocation2 [shape = 'f32[384,64]{1,0:T(8,128)}', space=vmem, size = 0x30000, scoped, tag = 'scratch operand']
  %s0 = inlined_call_operand.hbm [shape: bf16[384,4], index: 0, kind: input, shape index: {}]
  %s1 = inlined_call_operand.hbm [shape: bf16[4,64], index: 1, kind: input, shape index: {}]
  %s2 = inlined_call_operand.hbm [shape: f32[1,64], index: 2, kind: input, shape index: {}]
  %s3 = inlined_call_operand.hbm [shape: f32[1,64], index: 3, kind: input, shape index: {}]
  %s4 = inlined_call_operand.hbm [shape: bf16[384,64], index: 4, kind: output, shape index: {}]
  %s5 = sld [smem:[#allocation0]]
  $region50: #{tpu_custom_call.1} parent=0
    _
  %s7 = ssub.s32 1, %s5
  %s8 = scalar_select 0, %s7, %s5
  $region1: #{tpu_custom_call.1} parent=0
    #allocation3 [shape = 'u8[98304]{0}', space=vmem, size = 0x18000, scoped, tag = 'input window, operand 0, single buffered']
    #allocation4 [shape = 's32[1]{0}', space=sflag, size = 0x4, scoped, tag = 'scoped memory for tpu_custom_call.1']
    #allocation5 [shape = 's32[1]{0}', space=sflag, size = 0x4, scoped, tag = 'scoped memory for tpu_custom_call.1']
    #allocation6 [shape = 'u8[1024]{0}', space=vmem, size = 0x400, scoped, tag = 'input window, operand 1, single buffered']
    #allocation7 [shape = 's32[1]{0}', space=sflag, size = 0x4, scoped, tag = 'scoped memory for tpu_custom_call.1']
    #allocation8 [shape = 'u8[512]{0}', space=vmem, size = 0x400, scoped, tag = 'input window, operand 2, single buffered']
    #allocation9 [shape = 'u8[512]{0}', space=vmem, size = 0x400, scoped, tag = 'input window, operand 3, single buffered']
    #allocation10 [shape = 's32[1]{0}', space=sflag, size = 0x4, scoped, tag = 'scoped memory for tpu_custom_call.1']
    #allocation11 [shape = 'u8[98304]{0}', space=vmem, size = 0x18000, scoped, tag = 'output window, operand 0, single buffered']
    %9 = vsyncpa [#allocation4], 0
    %10 = vsyncpa [#allocation7], 0
    %11 = vsyncpa [#allocation10], 0
    %12 = vsyncpa [#allocation5], 0
    // Predicated region
    $region2: #{tpu_custom_call.1} parent=1 // pred_check
      _
    $region3: #{tpu_custom_call.1} parent=1 // pred_check_branch
      %14 = sbr.rel (0) target = $region5
    $region4: #{tpu_custom_call.1} parent=1 // pred_region
      %s16 = ssub.s32 3072, 3072
      %17 = vsyncadd [#allocation4], %s16
      %s18 = sshll.u32 [#allocation3], 4
      %s19 = int_to_ptr.vmem [resolvable:$true] %s18
      %24 = dma.hbm_to_vmem [thread:$0]  %s0, 3072, %s19, [#allocation4], 64, 64, 4
    $region5: #{tpu_custom_call.1} parent=1 // pred_fallthru
      _
    // Predicated region
    $region6: #{tpu_custom_call.1} parent=1 // pred_check
      _
    $region7: #{tpu_custom_call.1} parent=1 // pred_check_branch
      %26 = sbr.rel (0) target = $region9
    $region8: #{tpu_custom_call.1} parent=1 // pred_region
      %s28 = ssub.s32 32, 32
      %29 = vsyncadd [#allocation7], %s28
      %s31 = sshll.u32 [#allocation6], 4
      %s32 = int_to_ptr.vmem [resolvable:$true] %s31
      %34 = dma.hbm_to_vmem [thread:$0]  %s1, 32, %s32, [#allocation7]
    $region9: #{tpu_custom_call.1} parent=1 // pred_fallthru
      _
    // Predicated region
    $region10: #{tpu_custom_call.1} parent=1 // pred_check
      _
    $region11: #{tpu_custom_call.1} parent=1 // pred_check_branch
      %36 = sbr.rel (0) target = $region13
    $region12: #{tpu_custom_call.1} parent=1 // pred_region
      %s38 = ssub.s32 16, 16
      %39 = vsyncadd [#allocation7], %s38
      %s41 = sshll.u32 [#allocation8], 4
      %s42 = int_to_ptr.vmem [resolvable:$true] %s41
      %44 = dma.hbm_to_vmem [thread:$0]  %s2, 16, %s42, [#allocation7]
    $region13: #{tpu_custom_call.1} parent=1 // pred_fallthru
      _
    // Predicated region
    $region14: #{tpu_custom_call.1} parent=1 // pred_check
      _
    $region15: #{tpu_custom_call.1} parent=1 // pred_check_branch
      %46 = sbr.rel (0) target = $region17
    $region16: #{tpu_custom_call.1} parent=1 // pred_region
      %s48 = ssub.s32 16, 16
      %49 = vsyncadd [#allocation10], %s48
      %s51 = sshll.u32 [#allocation9], 4
      %s52 = int_to_ptr.vmem [resolvable:$true] %s51
      %54 = dma.hbm_to_vmem [thread:$0]  %s3, 16, %s52, [#allocation10]
    $region17: #{tpu_custom_call.1} parent=1 // pred_fallthru
      _
    // Predicated region
    $region18: #{tpu_custom_call.1} parent=1 // pred_check
      _
    $region19: #{tpu_custom_call.1} parent=1 // pred_check_branch
      %56 = sbr.rel (0) target = $region21
    $region20: #{tpu_custom_call.1} parent=1 // pred_region
      %57 = dma.done [#allocation4], 3072
    $region21: #{tpu_custom_call.1} parent=1 // pred_fallthru
      _
    // Predicated region
    $region22: #{tpu_custom_call.1} parent=1 // pred_check
      _
    $region23: #{tpu_custom_call.1} parent=1 // pred_check_branch
      %59 = sbr.rel (0) target = $region25
    $region24: #{tpu_custom_call.1} parent=1 // pred_region
      %60 = dma.done [#allocation7], 32
    $region25: #{tpu_custom_call.1} parent=1 // pred_fallthru
      _
    // Predicated region
    $region26: #{tpu_custom_call.1} parent=1 // pred_check
      _
    $region27: #{tpu_custom_call.1} parent=1 // pred_check_branch
      %62 = sbr.rel (0) target = $region29
    $region28: #{tpu_custom_call.1} parent=1 // pred_region
      %63 = dma.done [#allocation7], 16
    $region29: #{tpu_custom_call.1} parent=1 // pred_fallthru
      _
    // Predicated region
    $region30: #{tpu_custom_call.1} parent=1 // pred_check
      _
    $region31: #{tpu_custom_call.1} parent=1 // pred_check_branch
      %65 = sbr.rel (0) target = $region33
    $region32: #{tpu_custom_call.1} parent=1 // pred_region
      %66 = dma.done [#allocation10], 16
    $region33: #{tpu_custom_call.1} parent=1 // pred_fallthru
      _
    %p68 = scmp.eq.s32.totalorder 0, 0
    // Predicated region
    $region34: #{tpu_custom_call.1} parent=1 // pred_check
      %p69 = pneg %p68
    $region35: #{tpu_custom_call.1} parent=1 // pred_check_branch
      %71 = sbr.rel (%p69) target = $region37
    $region36: #{tpu_custom_call.1} parent=1 // pred_region
      %vm72 = vcmask 523264
      %73 = vst.msk [vmem:[#allocation2] sm:$0xff] %vm72, 0.0
      %74 = vst.msk [vmem:[#allocation2 + $0x8] sm:$0xff] %vm72, 0.0
      %75 = vst.msk [vmem:[#allocation2 + $0x10] sm:$0xff] %vm72, 0.0
      %76 = vst.msk [vmem:[#allocation2 + $0x18] sm:$0xff] %vm72, 0.0
      %77 = vst.msk [vmem:[#allocation2 + $0x20] sm:$0xff] %vm72, 0.0
      %78 = vst.msk [vmem:[#allocation2 + $0x28] sm:$0xff] %vm72, 0.0
      %79 = vst.msk [vmem:[#allocation2 + $0x30] sm:$0xff] %vm72, 0.0
      %80 = vst.msk [vmem:[#allocation2 + $0x38] sm:$0xff] %vm72, 0.0
      %81 = vst.msk [vmem:[#allocation2 + $0x40] sm:$0xff] %vm72, 0.0
      %82 = vst.msk [vmem:[#allocation2 + $0x48] sm:$0xff] %vm72, 0.0
      %83 = vst.msk [vmem:[#allocation2 + $0x50] sm:$0xff] %vm72, 0.0
      %84 = vst.msk [vmem:[#allocation2 + $0x58] sm:$0xff] %vm72, 0.0
      %85 = vst.msk [vmem:[#allocation2 + $0x60] sm:$0xff] %vm72, 0.0
      %86 = vst.msk [vmem:[#allocation2 + $0x68] sm:$0xff] %vm72, 0.0
      %87 = vst.msk [vmem:[#allocation2 + $0x70] sm:$0xff] %vm72, 0.0
      %88 = vst.msk [vmem:[#allocation2 + $0x78] sm:$0xff] %vm72, 0.0
      %89 = vst.msk [vmem:[#allocation2 + $0x80] sm:$0xff] %vm72, 0.0
      %90 = vst.msk [vmem:[#allocation2 + $0x88] sm:$0xff] %vm72, 0.0
      %91 = vst.msk [vmem:[#allocation2 + $0x90] sm:$0xff] %vm72, 0.0
      %92 = vst.msk [vmem:[#allocation2 + $0x98] sm:$0xff] %vm72, 0.0
      %93 = vst.msk [vmem:[#allocation2 + $0xa0] sm:$0xff] %vm72, 0.0
      %94 = vst.msk [vmem:[#allocation2 + $0xa8] sm:$0xff] %vm72, 0.0
      %95 = vst.msk [vmem:[#allocation2 + $0xb0] sm:$0xff] %vm72, 0.0
      %96 = vst.msk [vmem:[#allocation2 + $0xb8] sm:$0xff] %vm72, 0.0
      %97 = vst.msk [vmem:[#allocation2 + $0xc0] sm:$0xff] %vm72, 0.0
      %98 = vst.msk [vmem:[#allocation2 + $0xc8] sm:$0xff] %vm72, 0.0
      %99 = vst.msk [vmem:[#allocation2 + $0xd0] sm:$0xff] %vm72, 0.0
      %100 = vst.msk [vmem:[#allocation2 + $0xd8] sm:$0xff] %vm72, 0.0
      %101 = vst.msk [vmem:[#allocation2 + $0xe0] sm:$0xff] %vm72, 0.0
      %102 = vst.msk [vmem:[#allocation2 + $0xe8] sm:$0xff] %vm72, 0.0
      %103 = vst.msk [vmem:[#allocation2 + $0xf0] sm:$0xff] %vm72, 0.0
      %104 = vst.msk [vmem:[#allocation2 + $0xf8] sm:$0xff] %vm72, 0.0
      %105 = vst.msk [vmem:[#allocation2 + $0x100] sm:$0xff] %vm72, 0.0
      %106 = vst.msk [vmem:[#allocation2 + $0x108] sm:$0xff] %vm72, 0.0
      %107 = vst.msk [vmem:[#allocation2 + $0x110] sm:$0xff] %vm72, 0.0
      %108 = vst.msk [vmem:[#allocation2 + $0x118] sm:$0xff] %vm72, 0.0
      %109 = vst.msk [vmem:[#allocation2 + $0x120] sm:$0xff] %vm72, 0.0
      %110 = vst.msk [vmem:[#allocation2 + $0x128] sm:$0xff] %vm72, 0.0
      %111 = vst.msk [vmem:[#allocation2 + $0x130] sm:$0xff] %vm72, 0.0
      %112 = vst.msk [vmem:[#allocation2 + $0x138] sm:$0xff] %vm72, 0.0
      %113 = vst.msk [vmem:[#allocation2 + $0x140] sm:$0xff] %vm72, 0.0
      %114 = vst.msk [vmem:[#allocation2 + $0x148] sm:$0xff] %vm72, 0.0
      %115 = vst.msk [vmem:[#allocation2 + $0x150] sm:$0xff] %vm72, 0.0
      %116 = vst.msk [vmem:[#allocation2 + $0x158] sm:$0xff] %vm72, 0.0
      %117 = vst.msk [vmem:[#allocation2 + $0x160] sm:$0xff] %vm72, 0.0
      %118 = vst.msk [vmem:[#allocation2 + $0x168] sm:$0xff] %vm72, 0.0
      %119 = vst.msk [vmem:[#allocation2 + $0x170] sm:$0xff] %vm72, 0.0
      %120 = vst.msk [vmem:[#allocation2 + $0x178] sm:$0xff] %vm72, 0.0
    $region37: #{tpu_custom_call.1} parent=1 // pred_fallthru
      _
    %v121 = vld [vmem:[#allocation2] sm:$0xff]
    %v122 = vld [vmem:[#allocation2 + $0x8] sm:$0xff]
    %v123 = vld [vmem:[#allocation2 + $0x10] sm:$0xff]
    %v124 = vld [vmem:[#allocation2 + $0x18] sm:$0xff]
    %v125 = vld [vmem:[#allocation2 + $0x20] sm:$0xff]
    %v126 = vld [vmem:[#allocation2 + $0x28] sm:$0xff]
    %v127 = vld [vmem:[#allocation2 + $0x30] sm:$0xff]
    %v128 = vld [vmem:[#allocation2 + $0x38] sm:$0xff]
    %v129 = vld [vmem:[#allocation2 + $0x40] sm:$0xff]
    %v130 = vld [vmem:[#allocation2 + $0x48] sm:$0xff]
    %v131 = vld [vmem:[#allocation2 + $0x50] sm:$0xff]
    %v132 = vld [vmem:[#allocation2 + $0x58] sm:$0xff]
    %v133 = vld [vmem:[#allocation2 + $0x60] sm:$0xff]
    %v134 = vld [vmem:[#allocation2 + $0x68] sm:$0xff]
    %v135 = vld [vmem:[#allocation2 + $0x70] sm:$0xff]
    %v136 = vld [vmem:[#allocation2 + $0x78] sm:$0xff]
    %v137 = vld [vmem:[#allocation2 + $0x80] sm:$0xff]
    %v138 = vld [vmem:[#allocation2 + $0x88] sm:$0xff]
    %v139 = vld [vmem:[#allocation2 + $0x90] sm:$0xff]
    %v140 = vld [vmem:[#allocation2 + $0x98] sm:$0xff]
    %v141 = vld [vmem:[#allocation2 + $0xa0] sm:$0xff]
    %v142 = vld [vmem:[#allocation2 + $0xa8] sm:$0xff]
    %v143 = vld [vmem:[#allocation2 + $0xb0] sm:$0xff]
    %v144 = vld [vmem:[#allocation2 + $0xb8] sm:$0xff]
    %v145 = vld [vmem:[#allocation2 + $0xc0] sm:$0xff]
    %v146 = vld [vmem:[#allocation2 + $0xc8] sm:$0xff]
    %v147 = vld [vmem:[#allocation2 + $0xd0] sm:$0xff]
    %v148 = vld [vmem:[#allocation2 + $0xd8] sm:$0xff]
    %v149 = vld [vmem:[#allocation2 + $0xe0] sm:$0xff]
    %v150 = vld [vmem:[#allocation2 + $0xe8] sm:$0xff]
    %v151 = vld [vmem:[#allocation2 + $0xf0] sm:$0xff]
    %v152 = vld [vmem:[#allocation2 + $0xf8] sm:$0xff]
    %v153 = vld [vmem:[#allocation2 + $0x100] sm:$0xff]
    %v154 = vld [vmem:[#allocation2 + $0x108] sm:$0xff]
    %v155 = vld [vmem:[#allocation2 + $0x110] sm:$0xff]
    %v156 = vld [vmem:[#allocation2 + $0x118] sm:$0xff]
    %v157 = vld [vmem:[#allocation2 + $0x120] sm:$0xff]
    %v158 = vld [vmem:[#allocation2 + $0x128] sm:$0xff]
    %v159 = vld [vmem:[#allocation2 + $0x130] sm:$0xff]
    %v160 = vld [vmem:[#allocation2 + $0x138] sm:$0xff]
    %v161 = vld [vmem:[#allocation2 + $0x140] sm:$0xff]
    %v162 = vld [vmem:[#allocation2 + $0x148] sm:$0xff]
    %v163 = vld [vmem:[#allocation2 + $0x150] sm:$0xff]
    %v164 = vld [vmem:[#allocation2 + $0x158] sm:$0xff]
    %v165 = vld [vmem:[#allocation2 + $0x160] sm:$0xff]
    %v166 = vld [vmem:[#allocation2 + $0x168] sm:$0xff]
    %v167 = vld [vmem:[#allocation2 + $0x170] sm:$0xff]
    %v168 = vld [vmem:[#allocation2 + $0x178] sm:$0xff]
    %v169 = vld [vmem:[#allocation3] sm:$0xf]
    %v170 = vld [vmem:[#allocation3 + $0x4] sm:$0xf]
    %v171 = vld [vmem:[#allocation3 + $0x8] sm:$0xf]
    %v172 = vld [vmem:[#allocation3 + $0xc] sm:$0xf]
    %v173 = vld [vmem:[#allocation3 + $0x10] sm:$0xf]
    %v174 = vld [vmem:[#allocation3 + $0x14] sm:$0xf]
    %v175 = vld [vmem:[#allocation3 + $0x18] sm:$0xf]
    %v176 = vld [vmem:[#allocation3 + $0x1c] sm:$0xf]
    %v177 = vld [vmem:[#allocation3 + $0x20] sm:$0xf]
    %v178 = vld [vmem:[#allocation3 + $0x24] sm:$0xf]
    %v179 = vld [vmem:[#allocation3 + $0x28] sm:$0xf]
    %v180 = vld [vmem:[#allocation3 + $0x2c] sm:$0xf]
    %v181 = vld [vmem:[#allocation3 + $0x30] sm:$0xf]
    %v182 = vld [vmem:[#allocation3 + $0x34] sm:$0xf]
    %v183 = vld [vmem:[#allocation3 + $0x38] sm:$0xf]
    %v184 = vld [vmem:[#allocation3 + $0x3c] sm:$0xf]
    %v185 = vld [vmem:[#allocation3 + $0x40] sm:$0xf]
    %v186 = vld [vmem:[#allocation3 + $0x44] sm:$0xf]
    %v187 = vld [vmem:[#allocation3 + $0x48] sm:$0xf]
    %v188 = vld [vmem:[#allocation3 + $0x4c] sm:$0xf]
    %v189 = vld [vmem:[#allocation3 + $0x50] sm:$0xf]
    %v190 = vld [vmem:[#allocation3 + $0x54] sm:$0xf]
    %v191 = vld [vmem:[#allocation3 + $0x58] sm:$0xf]
    %v192 = vld [vmem:[#allocation3 + $0x5c] sm:$0xf]
    %v193 = vld [vmem:[#allocation3 + $0x60] sm:$0xf]
    %v194 = vld [vmem:[#allocation3 + $0x64] sm:$0xf]
    %v195 = vld [vmem:[#allocation3 + $0x68] sm:$0xf]
    %v196 = vld [vmem:[#allocation3 + $0x6c] sm:$0xf]
    %v197 = vld [vmem:[#allocation3 + $0x70] sm:$0xf]
    %v198 = vld [vmem:[#allocation3 + $0x74] sm:$0xf]
    %v199 = vld [vmem:[#allocation3 + $0x78] sm:$0xf]
    %v200 = vld [vmem:[#allocation3 + $0x7c] sm:$0xf]
    %v201 = vld [vmem:[#allocation3 + $0x80] sm:$0xf]
    %v202 = vld [vmem:[#allocation3 + $0x84] sm:$0xf]
    %v203 = vld [vmem:[#allocation3 + $0x88] sm:$0xf]
    %v204 = vld [vmem:[#allocation3 + $0x8c] sm:$0xf]
    %v205 = vld [vmem:[#allocation3 + $0x90] sm:$0xf]
    %v206 = vld [vmem:[#allocation3 + $0x94] sm:$0xf]
    %v207 = vld [vmem:[#allocation3 + $0x98] sm:$0xf]
    %v208 = vld [vmem:[#allocation3 + $0x9c] sm:$0xf]
    %v209 = vld [vmem:[#allocation3 + $0xa0] sm:$0xf]
    %v210 = vld [vmem:[#allocation3 + $0xa4] sm:$0xf]
    %v211 = vld [vmem:[#allocation3 + $0xa8] sm:$0xf]
    %v212 = vld [vmem:[#allocation3 + $0xac] sm:$0xf]
    %v213 = vld [vmem:[#allocation3 + $0xb0] sm:$0xf]
    %v214 = vld [vmem:[#allocation3 + $0xb4] sm:$0xf]
    %v215 = vld [vmem:[#allocation3 + $0xb8] sm:$0xf]
    %v216 = vld [vmem:[#allocation3 + $0xbc] sm:$0xf]
    %v217 = vld [vmem:[#allocation6] sm:$0x3]
    %v266 = vunpack.c.l.b16 %v169
    %v267 = vunpack.c.l.b16 %v170
    %v268 = vunpack.c.l.b16 %v171
    %v269 = vunpack.c.l.b16 %v172
    %v270 = vunpack.c.l.b16 %v173
    %v271 = vunpack.c.l.b16 %v174
    %v272 = vunpack.c.l.b16 %v175
    %v273 = vunpack.c.l.b16 %v176
    %v274 = vunpack.c.l.b16 %v177
    %v275 = vunpack.c.l.b16 %v178
    %v276 = vunpack.c.l.b16 %v179
    %v277 = vunpack.c.l.b16 %v180
    %v278 = vunpack.c.l.b16 %v181
    %v279 = vunpack.c.l.b16 %v182
    %v280 = vunpack.c.l.b16 %v183
    %v281 = vunpack.c.l.b16 %v184
    %v282 = vunpack.c.l.b16 %v185
    %v283 = vunpack.c.l.b16 %v186
    %v284 = vunpack.c.l.b16 %v187
    %v285 = vunpack.c.l.b16 %v188
    %v286 = vunpack.c.l.b16 %v189
    %v287 = vunpack.c.l.b16 %v190
    %v288 = vunpack.c.l.b16 %v191
    %v289 = vunpack.c.l.b16 %v192
    %v290 = vunpack.c.l.b16 %v193
    %v291 = vunpack.c.l.b16 %v194
    %v292 = vunpack.c.l.b16 %v195
    %v293 = vunpack.c.l.b16 %v196
    %v294 = vunpack.c.l.b16 %v197
    %v295 = vunpack.c.l.b16 %v198
    %v296 = vunpack.c.l.b16 %v199
    %v297 = vunpack.c.l.b16 %v200
    %v298 = vunpack.c.l.b16 %v201
    %v299 = vunpack.c.l.b16 %v202
    %v300 = vunpack.c.l.b16 %v203
    %v301 = vunpack.c.l.b16 %v204
    %v302 = vunpack.c.l.b16 %v205
    %v303 = vunpack.c.l.b16 %v206
    %v304 = vunpack.c.l.b16 %v207
    %v305 = vunpack.c.l.b16 %v208
    %v306 = vunpack.c.l.b16 %v209
    %v307 = vunpack.c.l.b16 %v210
    %v308 = vunpack.c.l.b16 %v211
    %v309 = vunpack.c.l.b16 %v212
    %v310 = vunpack.c.l.b16 %v213
    %v311 = vunpack.c.l.b16 %v214
    %v312 = vunpack.c.l.b16 %v215
    %v313 = vunpack.c.l.b16 %v216
    %v314 = vpack.c.b16 %v267, %v266
    %v315 = vpack.c.b16 %v269, %v268
    %v316 = vpack.c.b16 %v271, %v270
    %v317 = vpack.c.b16 %v273, %v272
    %v318 = vpack.c.b16 %v275, %v274
    %v319 = vpack.c.b16 %v277, %v276
    %v320 = vpack.c.b16 %v279, %v278
    %v321 = vpack.c.b16 %v281, %v280
    %v322 = vpack.c.b16 %v283, %v282
    %v323 = vpack.c.b16 %v285, %v284
    %v324 = vpack.c.b16 %v287, %v286
    %v325 = vpack.c.b16 %v289, %v288
    %v326 = vpack.c.b16 %v291, %v290
    %v327 = vpack.c.b16 %v293, %v292
    %v328 = vpack.c.b16 %v295, %v294
    %v329 = vpack.c.b16 %v297, %v296
    %v330 = vpack.c.b16 %v299, %v298
    %v331 = vpack.c.b16 %v301, %v300
    %v332 = vpack.c.b16 %v303, %v302
    %v333 = vpack.c.b16 %v305, %v304
    %v334 = vpack.c.b16 %v307, %v306
    %v335 = vpack.c.b16 %v309, %v308
    %v336 = vpack.c.b16 %v311, %v310
    %v337 = vpack.c.b16 %v313, %v312
    %vm338 = vcmask 31744
    %v340 = vsel %vm338, %v314, 0
    %v343 = vsel %vm338, %v315, 0
    %v346 = vsel %vm338, %v316, 0
    %v349 = vsel %vm338, %v317, 0
    %v352 = vsel %vm338, %v318, 0
    %v355 = vsel %vm338, %v319, 0
    %v358 = vsel %vm338, %v320, 0
    %v361 = vsel %vm338, %v321, 0
    %v364 = vsel %vm338, %v322, 0
    %v367 = vsel %vm338, %v323, 0
    %v370 = vsel %vm338, %v324, 0
    %v373 = vsel %vm338, %v325, 0
    %v376 = vsel %vm338, %v326, 0
    %v379 = vsel %vm338, %v327, 0
    %v382 = vsel %vm338, %v328, 0
    %v385 = vsel %vm338, %v329, 0
    %v388 = vsel %vm338, %v330, 0
    %v391 = vsel %vm338, %v331, 0
    %v394 = vsel %vm338, %v332, 0
    %v397 = vsel %vm338, %v333, 0
    %v400 = vsel %vm338, %v334, 0
    %v403 = vsel %vm338, %v335, 0
    %v406 = vsel %vm338, %v336, 0
    %v409 = vsel %vm338, %v337, 0
    %vm411 = vcmask 1041408
    %v413 = vsel %vm411, %v217, 0
    %415 = vmatprep.subr.bf16.mxu0 0
    %416 = vmatpush1.bf16.msra.mxu0 %v413
    %417 = vmatprep.subr.bf16.mxu0 0
    %418 = vmatpush1.bf16.msra.mxu0 0
    %419 = vmatprep.subr.bf16.mxu0 0
    %420 = vmatpush1.bf16.msra.mxu0 0
    %421 = vmatprep.subr.bf16.mxu0 0
    %422 = vmatpush1.bf16.msra.mxu0 0
    %423 = vmatprep.subr.bf16.mxu0 0
    %424 = vmatpush1.bf16.msra.mxu0 0
    %425 = vmatprep.subr.bf16.mxu0 0
    %426 = vmatpush1.bf16.msra.mxu0 0
    %427 = vmatprep.subr.bf16.mxu0 0
    %428 = vmatpush1.bf16.msra.mxu0 0
    %429 = vmatprep.subr.bf16.mxu0 0
    %430 = vmatpush1.bf16.msra.mxu0 0
    %431 = vmatprep.subr.bf16.mxu0 0
    %432 = vmatpush1.bf16.msra.mxu0 0
    %433 = vmatprep.subr.bf16.mxu0 0
    %434 = vmatpush1.bf16.msra.mxu0 0
    %435 = vmatprep.subr.bf16.mxu0 0
    %436 = vmatpush1.bf16.msra.mxu0 0
    %437 = vmatprep.subr.bf16.mxu0 0
    %438 = vmatpush1.bf16.msra.mxu0 0
    %439 = vmatprep.subr.bf16.mxu0 0
    %440 = vmatpush1.bf16.msra.mxu0 0
    %441 = vmatprep.subr.bf16.mxu0 0
    %442 = vmatpush1.bf16.msra.mxu0 0
    %443 = vmatprep.subr.bf16.mxu0 0
    %444 = vmatpush1.bf16.msra.mxu0 0
    %445 = vmatprep.subr.bf16.mxu0 0
    %446 = vmatpush1.bf16.msra.mxu0 0
    %447 = vmatprep.mubr.bf16.mxu0 0
    %448 = vmatmul.mubr.bf16.gmra.mrb[0].mxu0 %v340
    %v449 = vpop.f32.mrb[0].mxu0
    %v450 = vadd.f32 0.0, %v449
    %v451 = vpop.f32.mrb[0].mxu0
    %v452 = vpop.f32.mrb[0].mxu0
    %v453 = vadd.f32 0.0, %v452
    %v454 = vpop.f32.mrb[0].mxu0
    %455 = vmatprep.mubr.bf16.mxu0 0
    %456 = vmatmul.mubr.bf16.gmra.mrb[0].mxu0 %v343
    %v457 = vpop.f32.mrb[0].mxu0
    %v458 = vadd.f32 0.0, %v457
    %v459 = vpop.f32.mrb[0].mxu0
    %v460 = vpop.f32.mrb[0].mxu0
    %v461 = vadd.f32 0.0, %v460
    %v462 = vpop.f32.mrb[0].mxu0
    %463 = vmatprep.mubr.bf16.mxu0 0
    %464 = vmatmul.mubr.bf16.gmra.mrb[0].mxu0 %v346
    %v465 = vpop.f32.mrb[0].mxu0
    %v466 = vadd.f32 0.0, %v465
    %v467 = vpop.f32.mrb[0].mxu0
    %v468 = vpop.f32.mrb[0].mxu0
    %v469 = vadd.f32 0.0, %v468
    %v470 = vpop.f32.mrb[0].mxu0
    %471 = vmatprep.mubr.bf16.mxu0 0
    %472 = vmatmul.mubr.bf16.gmra.mrb[0].mxu0 %v349
    %v473 = vpop.f32.mrb[0].mxu0
    %v474 = vadd.f32 0.0, %v473
    %v475 = vpop.f32.mrb[0].mxu0
    %v476 = vpop.f32.mrb[0].mxu0
    %v477 = vadd.f32 0.0, %v476
    %v478 = vpop.f32.mrb[0].mxu0
    %479 = vmatprep.mubr.bf16.mxu0 0
    %480 = vmatmul.mubr.bf16.gmra.mrb[0].mxu0 %v352
    %v481 = vpop.f32.mrb[0].mxu0
    %v482 = vadd.f32 0.0, %v481
    %v483 = vpop.f32.mrb[0].mxu0
    %v484 = vpop.f32.mrb[0].mxu0
    %v485 = vadd.f32 0.0, %v484
    %v486 = vpop.f32.mrb[0].mxu0
    %487 = vmatprep.mubr.bf16.mxu0 0
    %488 = vmatmul.mubr.bf16.gmra.mrb[0].mxu0 %v355
    %v489 = vpop.f32.mrb[0].mxu0
    %v490 = vadd.f32 0.0, %v489
    %v491 = vpop.f32.mrb[0].mxu0
    %v492 = vpop.f32.mrb[0].mxu0
    %v493 = vadd.f32 0.0, %v492
    %v494 = vpop.f32.mrb[0].mxu0
    %495 = vmatprep.mubr.bf16.mxu0 0
    %496 = vmatmul.mubr.bf16.gmra.mrb[0].mxu0 %v358
    %v497 = vpop.f32.mrb[0].mxu0
    %v498 = vadd.f32 0.0, %v497
    %v499 = vpop.f32.mrb[0].mxu0
    %v500 = vpop.f32.mrb[0].mxu0
    %v501 = vadd.f32 0.0, %v500
    %v502 = vpop.f32.mrb[0].mxu0
    %503 = vmatprep.mubr.bf16.mxu0 0
    %504 = vmatmul.mubr.bf16.gmra.mrb[0].mxu0 %v361
    %v505 = vpop.f32.mrb[0].mxu0
    %v506 = vadd.f32 0.0, %v505
    %v507 = vpop.f32.mrb[0].mxu0
    %v508 = vpop.f32.mrb[0].mxu0
    %v509 = vadd.f32 0.0, %v508
    %v510 = vpop.f32.mrb[0].mxu0
    %511 = vmatprep.mubr.bf16.mxu0 0
    %512 = vmatmul.mubr.bf16.gmra.mrb[0].mxu0 %v364
    %v513 = vpop.f32.mrb[0].mxu0
    %v514 = vadd.f32 0.0, %v513
    %v515 = vpop.f32.mrb[0].mxu0
    %v516 = vpop.f32.mrb[0].mxu0
    %v517 = vadd.f32 0.0, %v516
    %v518 = vpop.f32.mrb[0].mxu0
    %519 = vmatprep.mubr.bf16.mxu0 0
    %520 = vmatmul.mubr.bf16.gmra.mrb[0].mxu0 %v367
    %v521 = vpop.f32.mrb[0].mxu0
    %v522 = vadd.f32 0.0, %v521
    %v523 = vpop.f32.mrb[0].mxu0
    %v524 = vpop.f32.mrb[0].mxu0
    %v525 = vadd.f32 0.0, %v524
    %v526 = vpop.f32.mrb[0].mxu0
    %527 = vmatprep.mubr.bf16.mxu0 0
    %528 = vmatmul.mubr.bf16.gmra.mrb[0].mxu0 %v370
    %v529 = vpop.f32.mrb[0].mxu0
    %v530 = vadd.f32 0.0, %v529
    %v531 = vpop.f32.mrb[0].mxu0
    %v532 = vpop.f32.mrb[0].mxu0
    %v533 = vadd.f32 0.0, %v532
    %v534 = vpop.f32.mrb[0].mxu0
    %535 = vmatprep.mubr.bf16.mxu0 0
    %536 = vmatmul.mubr.bf16.gmra.mrb[0].mxu0 %v373
    %v537 = vpop.f32.mrb[0].mxu0
    %v538 = vadd.f32 0.0, %v537
    %v539 = vpop.f32.mrb[0].mxu0
    %v540 = vpop.f32.mrb[0].mxu0
    %v541 = vadd.f32 0.0, %v540
    %v542 = vpop.f32.mrb[0].mxu0
    %543 = vmatprep.mubr.bf16.mxu0 0
    %544 = vmatmul.mubr.bf16.gmra.mrb[0].mxu0 %v376
    %v545 = vpop.f32.mrb[0].mxu0
    %v546 = vadd.f32 0.0, %v545
    %v547 = vpop.f32.mrb[0].mxu0
    %v548 = vpop.f32.mrb[0].mxu0
    %v549 = vadd.f32 0.0, %v548
    %v550 = vpop.f32.mrb[0].mxu0
    %551 = vmatprep.mubr.bf16.mxu0 0
    %552 = vmatmul.mubr.bf16.gmra.mrb[0].mxu0 %v379
    %v553 = vpop.f32.mrb[0].mxu0
    %v554 = vadd.f32 0.0, %v553
    %v555 = vpop.f32.mrb[0].mxu0
    %v556 = vpop.f32.mrb[0].mxu0
    %v557 = vadd.f32 0.0, %v556
    %v558 = vpop.f32.mrb[0].mxu0
    %559 = vmatprep.mubr.bf16.mxu0 0
    %560 = vmatmul.mubr.bf16.gmra.mrb[0].mxu0 %v382
    %v561 = vpop.f32.mrb[0].mxu0
    %v562 = vadd.f32 0.0, %v561
    %v563 = vpop.f32.mrb[0].mxu0
    %v564 = vpop.f32.mrb[0].mxu0
    %v565 = vadd.f32 0.0, %v564
    %v566 = vpop.f32.mrb[0].mxu0
    %567 = vmatprep.mubr.bf16.mxu0 0
    %568 = vmatmul.mubr.bf16.gmra.mrb[0].mxu0 %v385
    %v569 = vpop.f32.mrb[0].mxu0
    %v570 = vadd.f32 0.0, %v569
    %v571 = vpop.f32.mrb[0].mxu0
    %v572 = vpop.f32.mrb[0].mxu0
    %v573 = vadd.f32 0.0, %v572
    %v574 = vpop.f32.mrb[0].mxu0
    %575 = vmatprep.mubr.bf16.mxu0 0
    %576 = vmatmul.mubr.bf16.gmra.mrb[0].mxu0 %v388
    %v577 = vpop.f32.mrb[0].mxu0
    %v578 = vadd.f32 0.0, %v577
    %v579 = vpop.f32.mrb[0].mxu0
    %v580 = vpop.f32.mrb[0].mxu0
    %v581 = vadd.f32 0.0, %v580
    %v582 = vpop.f32.mrb[0].mxu0
    %583 = vmatprep.mubr.bf16.mxu0 0
    %584 = vmatmul.mubr.bf16.gmra.mrb[0].mxu0 %v391
    %v585 = vpop.f32.mrb[0].mxu0
    %v586 = vadd.f32 0.0, %v585
    %v587 = vpop.f32.mrb[0].mxu0
    %v588 = vpop.f32.mrb[0].mxu0
    %v589 = vadd.f32 0.0, %v588
    %v590 = vpop.f32.mrb[0].mxu0
    %591 = vmatprep.mubr.bf16.mxu0 0
    %592 = vmatmul.mubr.bf16.gmra.mrb[0].mxu0 %v394
    %v593 = vpop.f32.mrb[0].mxu0
    %v594 = vadd.f32 0.0, %v593
    %v595 = vpop.f32.mrb[0].mxu0
    %v596 = vpop.f32.mrb[0].mxu0
    %v597 = vadd.f32 0.0, %v596
    %v598 = vpop.f32.mrb[0].mxu0
    %599 = vmatprep.mubr.bf16.mxu0 0
    %600 = vmatmul.mubr.bf16.gmra.mrb[0].mxu0 %v397
    %v601 = vpop.f32.mrb[0].mxu0
    %v602 = vadd.f32 0.0, %v601
    %v603 = vpop.f32.mrb[0].mxu0
    %v604 = vpop.f32.mrb[0].mxu0
    %v605 = vadd.f32 0.0, %v604
    %v606 = vpop.f32.mrb[0].mxu0
    %607 = vmatprep.mubr.bf16.mxu0 0
    %608 = vmatmul.mubr.bf16.gmra.mrb[0].mxu0 %v400
    %v609 = vpop.f32.mrb[0].mxu0
    %v610 = vadd.f32 0.0, %v609
    %v611 = vpop.f32.mrb[0].mxu0
    %v612 = vpop.f32.mrb[0].mxu0
    %v613 = vadd.f32 0.0, %v612
    %v614 = vpop.f32.mrb[0].mxu0
    %615 = vmatprep.mubr.bf16.mxu0 0
    %616 = vmatmul.mubr.bf16.gmra.mrb[0].mxu0 %v403
    %v617 = vpop.f32.mrb[0].mxu0
    %v618 = vadd.f32 0.0, %v617
    %v619 = vpop.f32.mrb[0].mxu0
    %v620 = vpop.f32.mrb[0].mxu0
    %v621 = vadd.f32 0.0, %v620
    %v622 = vpop.f32.mrb[0].mxu0
    %623 = vmatprep.mubr.bf16.mxu0 0
    %624 = vmatmul.mubr.bf16.gmra.mrb[0].mxu0 %v406
    %v625 = vpop.f32.mrb[0].mxu0
    %v626 = vadd.f32 0.0, %v625
    %v627 = vpop.f32.mrb[0].mxu0
    %v628 = vpop.f32.mrb[0].mxu0
    %v629 = vadd.f32 0.0, %v628
    %v630 = vpop.f32.mrb[0].mxu0
    %631 = vmatprep.mubr.bf16.mxu0 0
    %632 = vmatmul.mubr.bf16.gmra.mrb[0].mxu0 %v409
    %v633 = vpop.f32.mrb[0].mxu0
    %v634 = vadd.f32 0.0, %v633
    %v635 = vpop.f32.mrb[0].mxu0
    %v636 = vpop.f32.mrb[0].mxu0
    %v637 = vadd.f32 0.0, %v636
    %v638 = vpop.f32.mrb[0].mxu0
    %639 = vdwg.mxu0
    %v640 = vadd.f32 %v121, %v450
    %v641 = vadd.f32 %v122, %v453
    %v642 = vadd.f32 %v123, %v458
    %v643 = vadd.f32 %v124, %v461
    %v644 = vadd.f32 %v125, %v466
    %v645 = vadd.f32 %v126, %v469
    %v646 = vadd.f32 %v127, %v474
    %v647 = vadd.f32 %v128, %v477
    %v648 = vadd.f32 %v129, %v482
    %v649 = vadd.f32 %v130, %v485
    %v650 = vadd.f32 %v131, %v490
    %v651 = vadd.f32 %v132, %v493
    %v652 = vadd.f32 %v133, %v498
    %v653 = vadd.f32 %v134, %v501
    %v654 = vadd.f32 %v135, %v506
    %v655 = vadd.f32 %v136, %v509
    %v656 = vadd.f32 %v137, %v514
    %v657 = vadd.f32 %v138, %v517
    %v658 = vadd.f32 %v139, %v522
    %v659 = vadd.f32 %v140, %v525
    %v660 = vadd.f32 %v141, %v530
    %v661 = vadd.f32 %v142, %v533
    %v662 = vadd.f32 %v143, %v538
    %v663 = vadd.f32 %v144, %v541
    %v664 = vadd.f32 %v145, %v546
    %v665 = vadd.f32 %v146, %v549
    %v666 = vadd.f32 %v147, %v554
    %v667 = vadd.f32 %v148, %v557
    %v668 = vadd.f32 %v149, %v562
    %v669 = vadd.f32 %v150, %v565
    %v670 = vadd.f32 %v151, %v570
    %v671 = vadd.f32 %v152, %v573
    %v672 = vadd.f32 %v153, %v578
    %v673 = vadd.f32 %v154, %v581
    %v674 = vadd.f32 %v155, %v586
    %v675 = vadd.f32 %v156, %v589
    %v676 = vadd.f32 %v157, %v594
    %v677 = vadd.f32 %v158, %v597
    %v678 = vadd.f32 %v159, %v602
    %v679 = vadd.f32 %v160, %v605
    %v680 = vadd.f32 %v161, %v610
    %v681 = vadd.f32 %v162, %v613
    %v682 = vadd.f32 %v163, %v618
    %v683 = vadd.f32 %v164, %v621
    %v684 = vadd.f32 %v165, %v626
    %v685 = vadd.f32 %v166, %v629
    %v686 = vadd.f32 %v167, %v634
    %v687 = vadd.f32 %v168, %v637
    %vm688 = vcmask 523264
    %689 = vst.msk [vmem:[#allocation2] sm:$0xff] %vm688, %v640
    %690 = vst.msk [vmem:[#allocation2 + $0x8] sm:$0xff] %vm688, %v641
    %691 = vst.msk [vmem:[#allocation2 + $0x10] sm:$0xff] %vm688, %v642
    %692 = vst.msk [vmem:[#allocation2 + $0x18] sm:$0xff] %vm688, %v643
    %693 = vst.msk [vmem:[#allocation2 + $0x20] sm:$0xff] %vm688, %v644
    %694 = vst.msk [vmem:[#allocation2 + $0x28] sm:$0xff] %vm688, %v645
    %695 = vst.msk [vmem:[#allocation2 + $0x30] sm:$0xff] %vm688, %v646
    %696 = vst.msk [vmem:[#allocation2 + $0x38] sm:$0xff] %vm688, %v647
    %697 = vst.msk [vmem:[#allocation2 + $0x40] sm:$0xff] %vm688, %v648
    %698 = vst.msk [vmem:[#allocation2 + $0x48] sm:$0xff] %vm688, %v649
    %699 = vst.msk [vmem:[#allocation2 + $0x50] sm:$0xff] %vm688, %v650
    %700 = vst.msk [vmem:[#allocation2 + $0x58] sm:$0xff] %vm688, %v651
    %701 = vst.msk [vmem:[#allocation2 + $0x60] sm:$0xff] %vm688, %v652
    %702 = vst.msk [vmem:[#allocation2 + $0x68] sm:$0xff] %vm688, %v653
    %703 = vst.msk [vmem:[#allocation2 + $0x70] sm:$0xff] %vm688, %v654
    %704 = vst.msk [vmem:[#allocation2 + $0x78] sm:$0xff] %vm688, %v655
    %705 = vst.msk [vmem:[#allocation2 + $0x80] sm:$0xff] %vm688, %v656
    %706 = vst.msk [vmem:[#allocation2 + $0x88] sm:$0xff] %vm688, %v657
    %707 = vst.msk [vmem:[#allocation2 + $0x90] sm:$0xff] %vm688, %v658
    %708 = vst.msk [vmem:[#allocation2 + $0x98] sm:$0xff] %vm688, %v659
    %709 = vst.msk [vmem:[#allocation2 + $0xa0] sm:$0xff] %vm688, %v660
    %710 = vst.msk [vmem:[#allocation2 + $0xa8] sm:$0xff] %vm688, %v661
    %711 = vst.msk [vmem:[#allocation2 + $0xb0] sm:$0xff] %vm688, %v662
    %712 = vst.msk [vmem:[#allocation2 + $0xb8] sm:$0xff] %vm688, %v663
    %713 = vst.msk [vmem:[#allocation2 + $0xc0] sm:$0xff] %vm688, %v664
    %714 = vst.msk [vmem:[#allocation2 + $0xc8] sm:$0xff] %vm688, %v665
    %715 = vst.msk [vmem:[#allocation2 + $0xd0] sm:$0xff] %vm688, %v666
    %716 = vst.msk [vmem:[#allocation2 + $0xd8] sm:$0xff] %vm688, %v667
    %717 = vst.msk [vmem:[#allocation2 + $0xe0] sm:$0xff] %vm688, %v668
    %718 = vst.msk [vmem:[#allocation2 + $0xe8] sm:$0xff] %vm688, %v669
    %719 = vst.msk [vmem:[#allocation2 + $0xf0] sm:$0xff] %vm688, %v670
    %720 = vst.msk [vmem:[#allocation2 + $0xf8] sm:$0xff] %vm688, %v671
    %721 = vst.msk [vmem:[#allocation2 + $0x100] sm:$0xff] %vm688, %v672
    %722 = vst.msk [vmem:[#allocation2 + $0x108] sm:$0xff] %vm688, %v673
    %723 = vst.msk [vmem:[#allocation2 + $0x110] sm:$0xff] %vm688, %v674
    %724 = vst.msk [vmem:[#allocation2 + $0x118] sm:$0xff] %vm688, %v675
    %725 = vst.msk [vmem:[#allocation2 + $0x120] sm:$0xff] %vm688, %v676
    %726 = vst.msk [vmem:[#allocation2 + $0x128] sm:$0xff] %vm688, %v677
    %727 = vst.msk [vmem:[#allocation2 + $0x130] sm:$0xff] %vm688, %v678
    %728 = vst.msk [vmem:[#allocation2 + $0x138] sm:$0xff] %vm688, %v679
    %729 = vst.msk [vmem:[#allocation2 + $0x140] sm:$0xff] %vm688, %v680
    %730 = vst.msk [vmem:[#allocation2 + $0x148] sm:$0xff] %vm688, %v681
    %731 = vst.msk [vmem:[#allocation2 + $0x150] sm:$0xff] %vm688, %v682
    %732 = vst.msk [vmem:[#allocation2 + $0x158] sm:$0xff] %vm688, %v683
    %733 = vst.msk [vmem:[#allocation2 + $0x160] sm:$0xff] %vm688, %v684
    %734 = vst.msk [vmem:[#allocation2 + $0x168] sm:$0xff] %vm688, %v685
    %735 = vst.msk [vmem:[#allocation2 + $0x170] sm:$0xff] %vm688, %v686
    %736 = vst.msk [vmem:[#allocation2 + $0x178] sm:$0xff] %vm688, %v687
    // Predicated region
    $region38: #{tpu_custom_call.1} parent=1 // pred_check
      %p737 = pneg %p68
    $region39: #{tpu_custom_call.1} parent=1 // pred_check_branch
      %739 = sbr.rel (%p737) target = $region41
    $region40: #{tpu_custom_call.1} parent=1 // pred_region
      %v740 = vld [vmem:[#allocation2] sm:$0xff]
      %v741 = vld [vmem:[#allocation2 + $0x8] sm:$0xff]
      %v742 = vld [vmem:[#allocation2 + $0x10] sm:$0xff]
      %v743 = vld [vmem:[#allocation2 + $0x18] sm:$0xff]
      %v744 = vld [vmem:[#allocation2 + $0x20] sm:$0xff]
      %v745 = vld [vmem:[#allocation2 + $0x28] sm:$0xff]
      %v746 = vld [vmem:[#allocation2 + $0x30] sm:$0xff]
      %v747 = vld [vmem:[#allocation2 + $0x38] sm:$0xff]
      %v748 = vld [vmem:[#allocation2 + $0x40] sm:$0xff]
      %v749 = vld [vmem:[#allocation2 + $0x48] sm:$0xff]
      %v750 = vld [vmem:[#allocation2 + $0x50] sm:$0xff]
      %v751 = vld [vmem:[#allocation2 + $0x58] sm:$0xff]
      %v752 = vld [vmem:[#allocation2 + $0x60] sm:$0xff]
      %v753 = vld [vmem:[#allocation2 + $0x68] sm:$0xff]
      %v754 = vld [vmem:[#allocation2 + $0x70] sm:$0xff]
      %v755 = vld [vmem:[#allocation2 + $0x78] sm:$0xff]
      %v756 = vld [vmem:[#allocation2 + $0x80] sm:$0xff]
      %v757 = vld [vmem:[#allocation2 + $0x88] sm:$0xff]
      %v758 = vld [vmem:[#allocation2 + $0x90] sm:$0xff]
      %v759 = vld [vmem:[#allocation2 + $0x98] sm:$0xff]
      %v760 = vld [vmem:[#allocation2 + $0xa0] sm:$0xff]
      %v761 = vld [vmem:[#allocation2 + $0xa8] sm:$0xff]
      %v762 = vld [vmem:[#allocation2 + $0xb0] sm:$0xff]
      %v763 = vld [vmem:[#allocation2 + $0xb8] sm:$0xff]
      %v764 = vld [vmem:[#allocation2 + $0xc0] sm:$0xff]
      %v765 = vld [vmem:[#allocation2 + $0xc8] sm:$0xff]
      %v766 = vld [vmem:[#allocation2 + $0xd0] sm:$0xff]
      %v767 = vld [vmem:[#allocation2 + $0xd8] sm:$0xff]
      %v768 = vld [vmem:[#allocation2 + $0xe0] sm:$0xff]
      %v769 = vld [vmem:[#allocation2 + $0xe8] sm:$0xff]
      %v770 = vld [vmem:[#allocation2 + $0xf0] sm:$0xff]
      %v771 = vld [vmem:[#allocation2 + $0xf8] sm:$0xff]
      %v772 = vld [vmem:[#allocation2 + $0x100] sm:$0xff]
      %v773 = vld [vmem:[#allocation2 + $0x108] sm:$0xff]
      %v774 = vld [vmem:[#allocation2 + $0x110] sm:$0xff]
      %v775 = vld [vmem:[#allocation2 + $0x118] sm:$0xff]
      %v776 = vld [vmem:[#allocation2 + $0x120] sm:$0xff]
      %v777 = vld [vmem:[#allocation2 + $0x128] sm:$0xff]
      %v778 = vld [vmem:[#allocation2 + $0x130] sm:$0xff]
      %v779 = vld [vmem:[#allocation2 + $0x138] sm:$0xff]
      %v780 = vld [vmem:[#allocation2 + $0x140] sm:$0xff]
      %v781 = vld [vmem:[#allocation2 + $0x148] sm:$0xff]
      %v782 = vld [vmem:[#allocation2 + $0x150] sm:$0xff]
      %v783 = vld [vmem:[#allocation2 + $0x158] sm:$0xff]
      %v784 = vld [vmem:[#allocation2 + $0x160] sm:$0xff]
      %v785 = vld [vmem:[#allocation2 + $0x168] sm:$0xff]
      %v786 = vld [vmem:[#allocation2 + $0x170] sm:$0xff]
      %v787 = vld [vmem:[#allocation2 + $0x178] sm:$0xff]
      %v788 = vld [vmem:[#allocation8] sm:$0x1]
      %v790 = vlaneseq
      %v791 = vshrl.u32 %v790, 7
      %v792 = vsub.s32 0, %v791
      %v793 = vrot.slane %v788, %v792
      %v795 = vmul.f32 %v740, %v793
      %v796 = vmul.f32 %v741, %v793
      %v797 = vmul.f32 %v742, %v793
      %v798 = vmul.f32 %v743, %v793
      %v799 = vmul.f32 %v744, %v793
      %v800 = vmul.f32 %v745, %v793
      %v801 = vmul.f32 %v746, %v793
      %v802 = vmul.f32 %v747, %v793
      %v803 = vmul.f32 %v748, %v793
      %v804 = vmul.f32 %v749, %v793
      %v805 = vmul.f32 %v750, %v793
      %v806 = vmul.f32 %v751, %v793
      %v807 = vmul.f32 %v752, %v793
      %v808 = vmul.f32 %v753, %v793
      %v809 = vmul.f32 %v754, %v793
      %v810 = vmul.f32 %v755, %v793
      %v811 = vmul.f32 %v756, %v793
      %v812 = vmul.f32 %v757, %v793
      %v813 = vmul.f32 %v758, %v793
      %v814 = vmul.f32 %v759, %v793
      %v815 = vmul.f32 %v760, %v793
      %v816 = vmul.f32 %v761, %v793
      %v817 = vmul.f32 %v762, %v793
      %v818 = vmul.f32 %v763, %v793
      %v819 = vmul.f32 %v764, %v793
      %v820 = vmul.f32 %v765, %v793
      %v821 = vmul.f32 %v766, %v793
      %v822 = vmul.f32 %v767, %v793
      %v823 = vmul.f32 %v768, %v793
      %v824 = vmul.f32 %v769, %v793
      %v825 = vmul.f32 %v770, %v793
      %v826 = vmul.f32 %v771, %v793
      %v827 = vmul.f32 %v772, %v793
      %v828 = vmul.f32 %v773, %v793
      %v829 = vmul.f32 %v774, %v793
      %v830 = vmul.f32 %v775, %v793
      %v831 = vmul.f32 %v776, %v793
      %v832 = vmul.f32 %v777, %v793
      %v833 = vmul.f32 %v778, %v793
      %v834 = vmul.f32 %v779, %v793
      %v835 = vmul.f32 %v780, %v793
      %v836 = vmul.f32 %v781, %v793
      %v837 = vmul.f32 %v782, %v793
      %v838 = vmul.f32 %v783, %v793
      %v839 = vmul.f32 %v784, %v793
      %v840 = vmul.f32 %v785, %v793
      %v841 = vmul.f32 %v786, %v793
      %v842 = vmul.f32 %v787, %v793
      %v843 = vld [vmem:[#allocation9] sm:$0x1]
      %v845 = vlaneseq
      %v846 = vshrl.u32 %v845, 7
      %v847 = vsub.s32 0, %v846
      %v848 = vrot.slane %v843, %v847
      %v850 = vadd.f32 %v795, %v848
      %v851 = vadd.f32 %v796, %v848
      %v852 = vadd.f32 %v797, %v848
      %v853 = vadd.f32 %v798, %v848
      %v854 = vadd.f32 %v799, %v848
      %v855 = vadd.f32 %v800, %v848
      %v856 = vadd.f32 %v801, %v848
      %v857 = vadd.f32 %v802, %v848
      %v858 = vadd.f32 %v803, %v848
      %v859 = vadd.f32 %v804, %v848
      %v860 = vadd.f32 %v805, %v848
      %v861 = vadd.f32 %v806, %v848
      %v862 = vadd.f32 %v807, %v848
      %v863 = vadd.f32 %v808, %v848
      %v864 = vadd.f32 %v809, %v848
      %v865 = vadd.f32 %v810, %v848
      %v866 = vadd.f32 %v811, %v848
      %v867 = vadd.f32 %v812, %v848
      %v868 = vadd.f32 %v813, %v848
      %v869 = vadd.f32 %v814, %v848
      %v870 = vadd.f32 %v815, %v848
      %v871 = vadd.f32 %v816, %v848
      %v872 = vadd.f32 %v817, %v848
      %v873 = vadd.f32 %v818, %v848
      %v874 = vadd.f32 %v819, %v848
      %v875 = vadd.f32 %v820, %v848
      %v876 = vadd.f32 %v821, %v848
      %v877 = vadd.f32 %v822, %v848
      %v878 = vadd.f32 %v823, %v848
      %v879 = vadd.f32 %v824, %v848
      %v880 = vadd.f32 %v825, %v848
      %v881 = vadd.f32 %v826, %v848
      %v882 = vadd.f32 %v827, %v848
      %v883 = vadd.f32 %v828, %v848
      %v884 = vadd.f32 %v829, %v848
      %v885 = vadd.f32 %v830, %v848
      %v886 = vadd.f32 %v831, %v848
      %v887 = vadd.f32 %v832, %v848
      %v888 = vadd.f32 %v833, %v848
      %v889 = vadd.f32 %v834, %v848
      %v890 = vadd.f32 %v835, %v848
      %v891 = vadd.f32 %v836, %v848
      %v892 = vadd.f32 %v837, %v848
      %v893 = vadd.f32 %v838, %v848
      %v894 = vadd.f32 %v839, %v848
      %v895 = vadd.f32 %v840, %v848
      %v896 = vadd.f32 %v841, %v848
      %v897 = vadd.f32 %v842, %v848
      %v898 = vmax.f32 %v850, 0.0
      %v899 = vmax.f32 %v851, 0.0
      %v900 = vmax.f32 %v852, 0.0
      %v901 = vmax.f32 %v853, 0.0
      %v902 = vmax.f32 %v854, 0.0
      %v903 = vmax.f32 %v855, 0.0
      %v904 = vmax.f32 %v856, 0.0
      %v905 = vmax.f32 %v857, 0.0
      %v906 = vmax.f32 %v858, 0.0
      %v907 = vmax.f32 %v859, 0.0
      %v908 = vmax.f32 %v860, 0.0
      %v909 = vmax.f32 %v861, 0.0
      %v910 = vmax.f32 %v862, 0.0
      %v911 = vmax.f32 %v863, 0.0
      %v912 = vmax.f32 %v864, 0.0
      %v913 = vmax.f32 %v865, 0.0
      %v914 = vmax.f32 %v866, 0.0
      %v915 = vmax.f32 %v867, 0.0
      %v916 = vmax.f32 %v868, 0.0
      %v917 = vmax.f32 %v869, 0.0
      %v918 = vmax.f32 %v870, 0.0
      %v919 = vmax.f32 %v871, 0.0
      %v920 = vmax.f32 %v872, 0.0
      %v921 = vmax.f32 %v873, 0.0
      %v922 = vmax.f32 %v874, 0.0
      %v923 = vmax.f32 %v875, 0.0
      %v924 = vmax.f32 %v876, 0.0
      %v925 = vmax.f32 %v877, 0.0
      %v926 = vmax.f32 %v878, 0.0
      %v927 = vmax.f32 %v879, 0.0
      %v928 = vmax.f32 %v880, 0.0
      %v929 = vmax.f32 %v881, 0.0
      %v930 = vmax.f32 %v882, 0.0
      %v931 = vmax.f32 %v883, 0.0
      %v932 = vmax.f32 %v884, 0.0
      %v933 = vmax.f32 %v885, 0.0
      %v934 = vmax.f32 %v886, 0.0
      %v935 = vmax.f32 %v887, 0.0
      %v936 = vmax.f32 %v888, 0.0
      %v937 = vmax.f32 %v889, 0.0
      %v938 = vmax.f32 %v890, 0.0
      %v939 = vmax.f32 %v891, 0.0
      %v940 = vmax.f32 %v892, 0.0
      %v941 = vmax.f32 %v893, 0.0
      %v942 = vmax.f32 %v894, 0.0
      %v943 = vmax.f32 %v895, 0.0
      %v944 = vmax.f32 %v896, 0.0
      %v945 = vmax.f32 %v897, 0.0
      %v946 = vpack.c.bf16 %v899, %v898
      %v947 = vpack.c.bf16 %v901, %v900
      %v948 = vpack.c.bf16 %v903, %v902
      %v949 = vpack.c.bf16 %v905, %v904
      %v950 = vpack.c.bf16 %v907, %v906
      %v951 = vpack.c.bf16 %v909, %v908
      %v952 = vpack.c.bf16 %v911, %v910
      %v953 = vpack.c.bf16 %v913, %v912
      %v954 = vpack.c.bf16 %v915, %v914
      %v955 = vpack.c.bf16 %v917, %v916
      %v956 = vpack.c.bf16 %v919, %v918
      %v957 = vpack.c.bf16 %v921, %v920
      %v958 = vpack.c.bf16 %v923, %v922
      %v959 = vpack.c.bf16 %v925, %v924
      %v960 = vpack.c.bf16 %v927, %v926
      %v961 = vpack.c.bf16 %v929, %v928
      %v962 = vpack.c.bf16 %v931, %v930
      %v963 = vpack.c.bf16 %v933, %v932
      %v964 = vpack.c.bf16 %v935, %v934
      %v965 = vpack.c.bf16 %v937, %v936
      %v966 = vpack.c.bf16 %v939, %v938
      %v967 = vpack.c.bf16 %v941, %v940
      %v968 = vpack.c.bf16 %v943, %v942
      %v969 = vpack.c.bf16 %v945, %v944
      %v994 = vunpack.c.l.b16 %v946
      %v995 = vunpack.c.h.b16 %v946
      %v996 = vunpack.c.l.b16 %v947
      %v997 = vunpack.c.h.b16 %v947
      %v998 = vunpack.c.l.b16 %v948
      %v999 = vunpack.c.h.b16 %v948
      %v1000 = vunpack.c.l.b16 %v949
      %v1001 = vunpack.c.h.b16 %v949
      %v1002 = vunpack.c.l.b16 %v950
      %v1003 = vunpack.c.h.b16 %v950
      %v1004 = vunpack.c.l.b16 %v951
      %v1005 = vunpack.c.h.b16 %v951
      %v1006 = vunpack.c.l.b16 %v952
      %v1007 = vunpack.c.h.b16 %v952
      %v1008 = vunpack.c.l.b16 %v953
      %v1009 = vunpack.c.h.b16 %v953
      %v1010 = vunpack.c.l.b16 %v954
      %v1011 = vunpack.c.h.b16 %v954
      %v1012 = vunpack.c.l.b16 %v955
      %v1013 = vunpack.c.h.b16 %v955
      %v1014 = vunpack.c.l.b16 %v956
      %v1015 = vunpack.c.h.b16 %v956
      %v1016 = vunpack.c.l.b16 %v957
      %v1017 = vunpack.c.h.b16 %v957
      %v1018 = vunpack.c.l.b16 %v958
      %v1019 = vunpack.c.h.b16 %v958
      %v1020 = vunpack.c.l.b16 %v959
      %v1021 = vunpack.c.h.b16 %v959
      %v1022 = vunpack.c.l.b16 %v960
      %v1023 = vunpack.c.h.b16 %v960
      %v1024 = vunpack.c.l.b16 %v961
      %v1025 = vunpack.c.h.b16 %v961
      %v1026 = vunpack.c.l.b16 %v962
      %v1027 = vunpack.c.h.b16 %v962
      %v1028 = vunpack.c.l.b16 %v963
      %v1029 = vunpack.c.h.b16 %v963
      %v1030 = vunpack.c.l.b16 %v964
      %v1031 = vunpack.c.h.b16 %v964
      %v1032 = vunpack.c.l.b16 %v965
      %v1033 = vunpack.c.h.b16 %v965
      %v1034 = vunpack.c.l.b16 %v966
      %v1035 = vunpack.c.h.b16 %v966
      %v1036 = vunpack.c.l.b16 %v967
      %v1037 = vunpack.c.h.b16 %v967
      %v1038 = vunpack.c.l.b16 %v968
      %v1039 = vunpack.c.h.b16 %v968
      %v1040 = vunpack.c.l.b16 %v969
      %v1041 = vunpack.c.h.b16 %v969
      %v1042 = vpack.c.b16 %v994, %v994
      %v1043 = vpack.c.b16 %v995, %v995
      %v1044 = vpack.c.b16 %v996, %v996
      %v1045 = vpack.c.b16 %v997, %v997
      %v1046 = vpack.c.b16 %v998, %v998
      %v1047 = vpack.c.b16 %v999, %v999
      %v1048 = vpack.c.b16 %v1000, %v1000
      %v1049 = vpack.c.b16 %v1001, %v1001
      %v1050 = vpack.c.b16 %v1002, %v1002
      %v1051 = vpack.c.b16 %v1003, %v1003
      %v1052 = vpack.c.b16 %v1004, %v1004
      %v1053 = vpack.c.b16 %v1005, %v1005
      %v1054 = vpack.c.b16 %v1006, %v1006
      %v1055 = vpack.c.b16 %v1007, %v1007
      %v1056 = vpack.c.b16 %v1008, %v1008
      %v1057 = vpack.c.b16 %v1009, %v1009
      %v1058 = vpack.c.b16 %v1010, %v1010
      %v1059 = vpack.c.b16 %v1011, %v1011
      %v1060 = vpack.c.b16 %v1012, %v1012
      %v1061 = vpack.c.b16 %v1013, %v1013
      %v1062 = vpack.c.b16 %v1014, %v1014
      %v1063 = vpack.c.b16 %v1015, %v1015
      %v1064 = vpack.c.b16 %v1016, %v1016
      %v1065 = vpack.c.b16 %v1017, %v1017
      %v1066 = vpack.c.b16 %v1018, %v1018
      %v1067 = vpack.c.b16 %v1019, %v1019
      %v1068 = vpack.c.b16 %v1020, %v1020
      %v1069 = vpack.c.b16 %v1021, %v1021
      %v1070 = vpack.c.b16 %v1022, %v1022
      %v1071 = vpack.c.b16 %v1023, %v1023
      %v1072 = vpack.c.b16 %v1024, %v1024
      %v1073 = vpack.c.b16 %v1025, %v1025
      %v1074 = vpack.c.b16 %v1026, %v1026
      %v1075 = vpack.c.b16 %v1027, %v1027
      %v1076 = vpack.c.b16 %v1028, %v1028
      %v1077 = vpack.c.b16 %v1029, %v1029
      %v1078 = vpack.c.b16 %v1030, %v1030
      %v1079 = vpack.c.b16 %v1031, %v1031
      %v1080 = vpack.c.b16 %v1032, %v1032
      %v1081 = vpack.c.b16 %v1033, %v1033
      %v1082 = vpack.c.b16 %v1034, %v1034
      %v1083 = vpack.c.b16 %v1035, %v1035
      %v1084 = vpack.c.b16 %v1036, %v1036
      %v1085 = vpack.c.b16 %v1037, %v1037
      %v1086 = vpack.c.b16 %v1038, %v1038
      %v1087 = vpack.c.b16 %v1039, %v1039
      %v1088 = vpack.c.b16 %v1040, %v1040
      %v1089 = vpack.c.b16 %v1041, %v1041
      %vm1138 = vcmask 519168
      %1139 = vst.msk [vmem:[#allocation11] sm:$0xf] %vm1138, %v1042
      %1140 = vst.msk [vmem:[#allocation11 + $0x4] sm:$0xf] %vm1138, %v1043
      %1141 = vst.msk [vmem:[#allocation11 + $0x8] sm:$0xf] %vm1138, %v1044
      %1142 = vst.msk [vmem:[#allocation11 + $0xc] sm:$0xf] %vm1138, %v1045
      %1143 = vst.msk [vmem:[#allocation11 + $0x10] sm:$0xf] %vm1138, %v1046
      %1144 = vst.msk [vmem:[#allocation11 + $0x14] sm:$0xf] %vm1138, %v1047
      %1145 = vst.msk [vmem:[#allocation11 + $0x18] sm:$0xf] %vm1138, %v1048
      %1146 = vst.msk [vmem:[#allocation11 + $0x1c] sm:$0xf] %vm1138, %v1049
      %1147 = vst.msk [vmem:[#allocation11 + $0x20] sm:$0xf] %vm1138, %v1050
      %1148 = vst.msk [vmem:[#allocation11 + $0x24] sm:$0xf] %vm1138, %v1051
      %1149 = vst.msk [vmem:[#allocation11 + $0x28] sm:$0xf] %vm1138, %v1052
      %1150 = vst.msk [vmem:[#allocation11 + $0x2c] sm:$0xf] %vm1138, %v1053
      %1151 = vst.msk [vmem:[#allocation11 + $0x30] sm:$0xf] %vm1138, %v1054
      %1152 = vst.msk [vmem:[#allocation11 + $0x34] sm:$0xf] %vm1138, %v1055
      %1153 = vst.msk [vmem:[#allocation11 + $0x38] sm:$0xf] %vm1138, %v1056
      %1154 = vst.msk [vmem:[#allocation11 + $0x3c] sm:$0xf] %vm1138, %v1057
      %1155 = vst.msk [vmem:[#allocation11 + $0x40] sm:$0xf] %vm1138, %v1058
      %1156 = vst.msk [vmem:[#allocation11 + $0x44] sm:$0xf] %vm1138, %v1059
      %1157 = vst.msk [vmem:[#allocation11 + $0x48] sm:$0xf] %vm1138, %v1060
      %1158 = vst.msk [vmem:[#allocation11 + $0x4c] sm:$0xf] %vm1138, %v1061
      %1159 = vst.msk [vmem:[#allocation11 + $0x50] sm:$0xf] %vm1138, %v1062
      %1160 = vst.msk [vmem:[#allocation11 + $0x54] sm:$0xf] %vm1138, %v1063
      %1161 = vst.msk [vmem:[#allocation11 + $0x58] sm:$0xf] %vm1138, %v1064
      %1162 = vst.msk [vmem:[#allocation11 + $0x5c] sm:$0xf] %vm1138, %v1065
      %1163 = vst.msk [vmem:[#allocation11 + $0x60] sm:$0xf] %vm1138, %v1066
      %1164 = vst.msk [vmem:[#allocation11 + $0x64] sm:$0xf] %vm1138, %v1067
      %1165 = vst.msk [vmem:[#allocation11 + $0x68] sm:$0xf] %vm1138, %v1068
      %1166 = vst.msk [vmem:[#allocation11 + $0x6c] sm:$0xf] %vm1138, %v1069
      %1167 = vst.msk [vmem:[#allocation11 + $0x70] sm:$0xf] %vm1138, %v1070
      %1168 = vst.msk [vmem:[#allocation11 + $0x74] sm:$0xf] %vm1138, %v1071
      %1169 = vst.msk [vmem:[#allocation11 + $0x78] sm:$0xf] %vm1138, %v1072
      %1170 = vst.msk [vmem:[#allocation11 + $0x7c] sm:$0xf] %vm1138, %v1073
      %1171 = vst.msk [vmem:[#allocation11 + $0x80] sm:$0xf] %vm1138, %v1074
      %1172 = vst.msk [vmem:[#allocation11 + $0x84] sm:$0xf] %vm1138, %v1075
      %1173 = vst.msk [vmem:[#allocation11 + $0x88] sm:$0xf] %vm1138, %v1076
      %1174 = vst.msk [vmem:[#allocation11 + $0x8c] sm:$0xf] %vm1138, %v1077
      %1175 = vst.msk [vmem:[#allocation11 + $0x90] sm:$0xf] %vm1138, %v1078
      %1176 = vst.msk [vmem:[#allocation11 + $0x94] sm:$0xf] %vm1138, %v1079
      %1177 = vst.msk [vmem:[#allocation11 + $0x98] sm:$0xf] %vm1138, %v1080
      %1178 = vst.msk [vmem:[#allocation11 + $0x9c] sm:$0xf] %vm1138, %v1081
      %1179 = vst.msk [vmem:[#allocation11 + $0xa0] sm:$0xf] %vm1138, %v1082
      %1180 = vst.msk [vmem:[#allocation11 + $0xa4] sm:$0xf] %vm1138, %v1083
      %1181 = vst.msk [vmem:[#allocation11 + $0xa8] sm:$0xf] %vm1138, %v1084
      %1182 = vst.msk [vmem:[#allocation11 + $0xac] sm:$0xf] %vm1138, %v1085
      %1183 = vst.msk [vmem:[#allocation11 + $0xb0] sm:$0xf] %vm1138, %v1086
      %1184 = vst.msk [vmem:[#allocation11 + $0xb4] sm:$0xf] %vm1138, %v1087
      %1185 = vst.msk [vmem:[#allocation11 + $0xb8] sm:$0xf] %vm1138, %v1088
      %1186 = vst.msk [vmem:[#allocation11 + $0xbc] sm:$0xf] %vm1138, %v1089
    $region41: #{tpu_custom_call.1} parent=1 // pred_fallthru
      _
    // Predicated region
    $region42: #{tpu_custom_call.1} parent=1 // pred_check
      _
    $region43: #{tpu_custom_call.1} parent=1 // pred_check_branch
      %1188 = sbr.rel (0) target = $region45
    $region44: #{tpu_custom_call.1} parent=1 // pred_region
      %s1190 = ssub.s32 3072, 3072
      %1191 = vsyncadd [#allocation5], %s1190
      %s1192 = sshll.u32 [#allocation11], 4
      %s1193 = int_to_ptr.vmem [resolvable:$true] %s1192
      %1198 = dma.vmem_to_hbm [thread:$0]  %s1193, 3072, %s4, [#allocation5], 64, 64, 4
    $region45: #{tpu_custom_call.1} parent=1 // pred_fallthru
      _
    // Predicated region
    $region46: #{tpu_custom_call.1} parent=1 // pred_check
      _
    $region47: #{tpu_custom_call.1} parent=1 // pred_check_branch
      %1200 = sbr.rel (0) target = $region49
    $region48: #{tpu_custom_call.1} parent=1 // pred_region
      %1201 = dma.done [#allocation5], 3072
    $region49: #{tpu_custom_call.1} parent=1 // pred_fallthru
      _
    %1202 = vsyncpa [#allocation4], 1
    %1203 = vsyncpa [#allocation7], 1
    %1204 = vsyncpa [#allocation10], 1
    %1205 = vsyncpa [#allocation5], 1

</llo_original>
